<compile_context>
chip_gen: v5e
topology: v5e:2x2
jax: 0.10.0
libtpu: 0.0.40
codegen_flags: <defaults>
</compile_context>

<pallas_src>
import functools
import math

import jax
import jax.numpy as jnp
from jax.experimental import pallas as pl
from jax.experimental.pallas import tpu as pltpu


def _round_up(x: int, m: int) -> int:
    return ((x + m - 1) // m) * m


# ---------------------------------------------------------------------------
# Fused kernel: full MLP (both heads) for one batch tile.
# ---------------------------------------------------------------------------
def _mlp_fused_kernel(x_ref, *refs, n_layers: int):
    # refs layout:
    #   [w0_mean, b0_mean, w1_mean, b1_mean, ...,
    #    w0_logv, b0_logv, w1_logv, b1_logv, ...,
    #    mean_out_ref, logvar_out_ref]
    mean_refs = refs[: 2 * n_layers]
    logvar_refs = refs[2 * n_layers: 4 * n_layers]
    mean_out_ref = refs[4 * n_layers]
    logvar_out_ref = refs[4 * n_layers + 1]

    # Load the x tile ONCE; shared by both heads.
    x = x_ref[...].astype(jnp.float32)

    def run_head(param_refs, out_ref):
        h = x
        for i in range(n_layers):
            w = param_refs[2 * i][...]        # (Din_pad, Dout_pad)
            b = param_refs[2 * i + 1][...]    # (1, Dout_pad)
            h = jnp.dot(h, w, preferred_element_type=jnp.float32) + b
            if i < n_layers - 1:              # Tanh only BETWEEN layers
                h = jnp.tanh(h)
        out_ref[...] = h.astype(out_ref.dtype)

    run_head(mean_refs, mean_out_ref)
    run_head(logvar_refs, logvar_out_ref)


# ---------------------------------------------------------------------------
# Parameter construction (mimics nn.Linear default init; W stored (in, out)).
# ---------------------------------------------------------------------------
def init_mlp_params(key, sizes, bias=True):
    params = []
    for i in range(len(sizes) - 1):
        d_in, d_out = sizes[i], sizes[i + 1]
        key, kw, kb = jax.random.split(key, 3)
        bound = 1.0 / math.sqrt(d_in)
        w = jax.random.uniform(kw, (d_in, d_out), jnp.float32, -bound, bound)
        if bias:
            b = jax.random.uniform(kb, (d_out,), jnp.float32, -bound, bound)
        else:
            b = jnp.zeros((d_out,), jnp.float32)
        params.append((w, b))
    return params


def pad_params(params, padded_sizes):
    """Zero-pad W -> (Din_pad, Dout_pad) and b -> (1, Dout_pad), once, at init."""
    padded = []
    for i, (w, b) in enumerate(params):
        din_p, dout_p = padded_sizes[i], padded_sizes[i + 1]
        wp = jnp.zeros((din_p, dout_p), jnp.float32)
        wp = wp.at[: w.shape[0], : w.shape[1]].set(w)
        bp = jnp.zeros((1, dout_p), jnp.float32)
        bp = bp.at[0, : b.shape[0]].set(b)
        padded.append((wp, bp))
    return padded


# ---------------------------------------------------------------------------
# Forward pass: single fused pallas_call, batch-tiled.
# ---------------------------------------------------------------------------
def mlp_forward(x, model):
    batch, d_in = x.shape
    assert d_in == model.sizes[0], "input feature dim mismatch"
    p = model.padded_sizes
    n_layers = model.n_layers
    d_out = model.sizes[-1]

    # Batch tiling: TB multiple of 8, <= batch_tile_cap, divides padded batch.
    tb = min(model.batch_tile_cap, _round_up(batch, 8))
    batch_pad = _round_up(batch, tb)
    n_tiles = batch_pad // tb

    # Zero-pad x to (batch_pad, Din_pad) once outside the kernel.
    x_pad = jnp.zeros((batch_pad, p[0]), jnp.float32)
    x_pad = x_pad.at[:batch, :d_in].set(x.astype(jnp.float32))

    # Flatten params + build BlockSpecs. Weights/bias: same block for every
    # grid step -> VMEM-resident across the batch loop.
    flat_params = []
    in_specs = [pl.BlockSpec((tb, p[0]), lambda i: (i, 0))]
    for head in (model.mean_params_padded, model.logvar_params_padded):
        for li, (w, b) in enumerate(head):
            flat_params.append(w)
            flat_params.append(b)
            in_specs.append(pl.BlockSpec((p[li], p[li + 1]), lambda i: (0, 0)))
            in_specs.append(pl.BlockSpec((1, p[li + 1]), lambda i: (0, 0)))

    out_shape = [
        jax.ShapeDtypeStruct((batch_pad, p[-1]), jnp.float32),
        jax.ShapeDtypeStruct((batch_pad, p[-1]), jnp.float32),
    ]
    out_specs = [
        pl.BlockSpec((tb, p[-1]), lambda i: (i, 0)),
        pl.BlockSpec((tb, p[-1]), lambda i: (i, 0)),
    ]

    # Advisory cost estimate for the XLA scheduler.
    flops = 2 * 2 * batch_pad * sum(p[i] * p[i + 1] for i in range(n_layers))
    transcendentals = 2 * batch_pad * sum(p[1:-1])
    bytes_accessed = (
        x_pad.size * 4
        + sum(w.size * 4 + b.size * 4
              for w, b in model.mean_params_padded + model.logvar_params_padded)
        + 2 * batch_pad * p[-1] * 4
    )

    kernel = functools.partial(_mlp_fused_kernel, n_layers=n_layers)
    mean_pad, logvar_pad = pl.pallas_call(
        kernel,
        out_shape=out_shape,
        grid=(n_tiles,),
        in_specs=in_specs,
        out_specs=out_specs,
        compiler_params=pltpu.CompilerParams(
            dimension_semantics=("parallel",),  # batch tiles are independent
        ),
        cost_estimate=pl.CostEstimate(
            flops=flops,
            transcendentals=transcendentals,
            bytes_accessed=bytes_accessed,
        ),
    )(x_pad, *flat_params)

    # Strip padding.
    return mean_pad[:batch, :d_out], logvar_pad[:batch, :d_out]


class MLPPallas:
    """Pallas equivalent of the PyTorch MLP module (mean_model + logvar_model)."""

    def __init__(self, sizes, bias=True, key=jax.random.PRNGKey(42),
                 batch_tile=256):
        self.sizes = tuple(sizes)
        self.n_layers = len(sizes) - 1
        # Lane-pad every feature dim to a multiple of 128.
        self.padded_sizes = tuple(_round_up(s, 128) for s in self.sizes)
        self.batch_tile_cap = batch_tile
        k_mean, k_logvar = jax.random.split(key)
        self.mean_params = init_mlp_params(k_mean, sizes, bias)
        self.logvar_params = init_mlp_params(k_logvar, sizes, bias)
        self.mean_params_padded = pad_params(self.mean_params, self.padded_sizes)
        self.logvar_params_padded = pad_params(self.logvar_params, self.padded_sizes)

    def __call__(self, x):
        return mlp_forward(x, self)


# ---------------------------------------------------------------------------
# Pure-JAX reference (unpadded) for correctness checking.
# ---------------------------------------------------------------------------
def run_sequential_ref(x, params):
    n = len(params)
    h = x
    for i, (w, b) in enumerate(params):
        h = h @ w + b
        if i < n - 1:
            h = jnp.tanh(h)
    return h


if __name__ == "__main__":
    sizes = (16, 32, 8)   # in=16, hidden=32, out=8 (small, per the module spec)
    batch = 2

    key = jax.random.PRNGKey(0)
    x = jax.random.normal(key, (batch, sizes[0]), jnp.float32)

    model = MLPPallas(sizes, bias=True)
    mean_out, logvar_out = model(x)
    jax.block_until_ready(mean_out)
    jax.block_until_ready(logvar_out)

    # Correctness vs pure-JAX reference on the unpadded parameters.
    mean_ref = run_sequential_ref(x, model.mean_params)
    logvar_ref = run_sequential_ref(x, model.logvar_params)
    assert mean_out.shape == (batch, sizes[-1])
    assert logvar_out.shape == (batch, sizes[-1])
    assert jnp.allclose(mean_out, mean_ref, atol=1e-5, rtol=1e-5)
    assert jnp.allclose(logvar_out, logvar_ref, atol=1e-5, rtol=1e-5)

    print("KERNEL_OK")
</pallas_src>

<mosaic_0001>
module attributes {stable_mosaic.version = 11 : i64} {
  func.func @_mlp_fused_kernel(%arg0: i32, %arg1: memref<8x128xf32, #tpu.memory_space<vmem>>, %arg2: memref<128x128xf32, #tpu.memory_space<vmem>>, %arg3: memref<1x128xf32, #tpu.memory_space<vmem>>, %arg4: memref<128x128xf32, #tpu.memory_space<vmem>>, %arg5: memref<1x128xf32, #tpu.memory_space<vmem>>, %arg6: memref<128x128xf32, #tpu.memory_space<vmem>>, %arg7: memref<1x128xf32, #tpu.memory_space<vmem>>, %arg8: memref<128x128xf32, #tpu.memory_space<vmem>>, %arg9: memref<1x128xf32, #tpu.memory_space<vmem>>, %arg10: memref<8x128xf32, #tpu.memory_space<vmem>>, %arg11: memref<8x128xf32, #tpu.memory_space<vmem>>) attributes {dimension_semantics = [#tpu.dimension_semantics<parallel>], iteration_bounds = array<i64: 1>, scalar_prefetch = 0 : i64, scratch_operands = 0 : i64, tpu.core_type = #tpu.core_type<tc>, window_params = [{transform_indices = @transform_0, window_bounds = array<i64: 8, 128>}, {pipeline_mode = #tpu.pipeline_mode<synchronous>, transform_indices = @transform_1, window_bounds = array<i64: 128, 128>}, {pipeline_mode = #tpu.pipeline_mode<synchronous>, transform_indices = @transform_2, window_bounds = array<i64: 1, 128>}, {pipeline_mode = #tpu.pipeline_mode<synchronous>, transform_indices = @transform_3, window_bounds = array<i64: 128, 128>}, {pipeline_mode = #tpu.pipeline_mode<synchronous>, transform_indices = @transform_4, window_bounds = array<i64: 1, 128>}, {pipeline_mode = #tpu.pipeline_mode<synchronous>, transform_indices = @transform_5, window_bounds = array<i64: 128, 128>}, {pipeline_mode = #tpu.pipeline_mode<synchronous>, transform_indices = @transform_6, window_bounds = array<i64: 1, 128>}, {pipeline_mode = #tpu.pipeline_mode<synchronous>, transform_indices = @transform_7, window_bounds = array<i64: 128, 128>}, {pipeline_mode = #tpu.pipeline_mode<synchronous>, transform_indices = @transform_8, window_bounds = array<i64: 1, 128>}, {transform_indices = @transform_9, window_bounds = array<i64: 8, 128>}, {transform_indices = @transform_10, window_bounds = array<i64: 8, 128>}]} {
    %c0 = arith.constant 0 : index
    %c0_0 = arith.constant 0 : index
    %0 = vector.load %arg1[%c0, %c0_0] : memref<8x128xf32, #tpu.memory_space<vmem>>, vector<8x128xf32>
    %c0_1 = arith.constant 0 : index
    %c0_2 = arith.constant 0 : index
    %1 = vector.load %arg2[%c0_1, %c0_2] : memref<128x128xf32, #tpu.memory_space<vmem>>, vector<128x128xf32>
    %c0_3 = arith.constant 0 : index
    %c0_4 = arith.constant 0 : index
    %2 = vector.load %arg3[%c0_3, %c0_4] : memref<1x128xf32, #tpu.memory_space<vmem>>, vector<1x128xf32>
    %cst = arith.constant dense<0.000000e+00> : vector<8x128xf32>
    %3 = tpu.matmul %0, %1, %cst {dimension_numbers = #tpu.dot_dimension_numbers<[1], [0], [0], [1], [0, 0, 1, 1], [], []>} : vector<8x128xf32>, vector<128x128xf32>, vector<8x128xf32> -> vector<8x128xf32>
    %4 = vector.broadcast %2 : vector<1x128xf32> to vector<8x128xf32>
    %5 = arith.addf %3, %4 : vector<8x128xf32>
    %6 = math.tanh %5 : vector<8x128xf32>
    %c0_5 = arith.constant 0 : index
    %c0_6 = arith.constant 0 : index
    %7 = vector.load %arg4[%c0_5, %c0_6] : memref<128x128xf32, #tpu.memory_space<vmem>>, vector<128x128xf32>
    %c0_7 = arith.constant 0 : index
    %c0_8 = arith.constant 0 : index
    %8 = vector.load %arg5[%c0_7, %c0_8] : memref<1x128xf32, #tpu.memory_space<vmem>>, vector<1x128xf32>
    %cst_9 = arith.constant dense<0.000000e+00> : vector<8x128xf32>
    %9 = tpu.matmul %6, %7, %cst_9 {dimension_numbers = #tpu.dot_dimension_numbers<[1], [0], [0], [1], [0, 0, 1, 1], [], []>} : vector<8x128xf32>, vector<128x128xf32>, vector<8x128xf32> -> vector<8x128xf32>
    %10 = vector.broadcast %8 : vector<1x128xf32> to vector<8x128xf32>
    %11 = arith.addf %9, %10 : vector<8x128xf32>
    %c0_10 = arith.constant 0 : index
    %c0_11 = arith.constant 0 : index
    %12 = vector.load %arg10[%c0_10, %c0_11] : memref<8x128xf32, #tpu.memory_space<vmem>>, vector<8x128xf32>
    tpu.vector_store %arg10[%c0_10, %c0_11], %11 {strides = array<i32>} : memref<8x128xf32, #tpu.memory_space<vmem>>, vector<8x128xf32>,
    %c0_12 = arith.constant 0 : index
    %c0_13 = arith.constant 0 : index
    %13 = vector.load %arg6[%c0_12, %c0_13] : memref<128x128xf32, #tpu.memory_space<vmem>>, vector<128x128xf32>
    %c0_14 = arith.constant 0 : index
    %c0_15 = arith.constant 0 : index
    %14 = vector.load %arg7[%c0_14, %c0_15] : memref<1x128xf32, #tpu.memory_space<vmem>>, vector<1x128xf32>
    %cst_16 = arith.constant dense<0.000000e+00> : vector<8x128xf32>
    %15 = tpu.matmul %0, %13, %cst_16 {dimension_numbers = #tpu.dot_dimension_numbers<[1], [0], [0], [1], [0, 0, 1, 1], [], []>} : vector<8x128xf32>, vector<128x128xf32>, vector<8x128xf32> -> vector<8x128xf32>
    %16 = vector.broadcast %14 : vector<1x128xf32> to vector<8x128xf32>
    %17 = arith.addf %15, %16 : vector<8x128xf32>
    %18 = math.tanh %17 : vector<8x128xf32>
    %c0_17 = arith.constant 0 : index
    %c0_18 = arith.constant 0 : index
    %19 = vector.load %arg8[%c0_17, %c0_18] : memref<128x128xf32, #tpu.memory_space<vmem>>, vector<128x128xf32>
    %c0_19 = arith.constant 0 : index
    %c0_20 = arith.constant 0 : index
    %20 = vector.load %arg9[%c0_19, %c0_20] : memref<1x128xf32, #tpu.memory_space<vmem>>, vector<1x128xf32>
    %cst_21 = arith.constant dense<0.000000e+00> : vector<8x128xf32>
    %21 = tpu.matmul %18, %19, %cst_21 {dimension_numbers = #tpu.dot_dimension_numbers<[1], [0], [0], [1], [0, 0, 1, 1], [], []>} : vector<8x128xf32>, vector<128x128xf32>, vector<8x128xf32> -> vector<8x128xf32>
    %22 = vector.broadcast %20 : vector<1x128xf32> to vector<8x128xf32>
    %23 = arith.addf %21, %22 : vector<8x128xf32>
    %c0_22 = arith.constant 0 : index
    %c0_23 = arith.constant 0 : index
    %24 = vector.load %arg11[%c0_22, %c0_23] : memref<8x128xf32, #tpu.memory_space<vmem>>, vector<8x128xf32>
    tpu.vector_store %arg11[%c0_22, %c0_23], %23 {strides = array<i32>} : memref<8x128xf32, #tpu.memory_space<vmem>>, vector<8x128xf32>,
    return
  }
  func.func @transform_0(%arg0: i32) -> (i32, i32) {
    %c0_i32 = arith.constant 0 : i32
    %c0_i32_0 = arith.constant 0 : i32
    return %arg0, %c0_i32 : i32, i32
  }
  func.func @transform_1(%arg0: i32) -> (i32, i32) {
    %c0_i32 = arith.constant 0 : i32
    %c0_i32_0 = arith.constant 0 : i32
    %c0_i32_1 = arith.constant 0 : i32
    return %c0_i32, %c0_i32_0 : i32, i32
  }
  func.func @transform_2(%arg0: i32) -> (i32, i32) {
    %c0_i32 = arith.constant 0 : i32
    %c0_i32_0 = arith.constant 0 : i32
    %c0_i32_1 = arith.constant 0 : i32
    return %c0_i32, %c0_i32_0 : i32, i32
  }
  func.func @transform_3(%arg0: i32) -> (i32, i32) {
    %c0_i32 = arith.constant 0 : i32
    %c0_i32_0 = arith.constant 0 : i32
    %c0_i32_1 = arith.constant 0 : i32
    return %c0_i32, %c0_i32_0 : i32, i32
  }
  func.func @transform_4(%arg0: i32) -> (i32, i32) {
    %c0_i32 = arith.constant 0 : i32
    %c0_i32_0 = arith.constant 0 : i32
    %c0_i32_1 = arith.constant 0 : i32
    return %c0_i32, %c0_i32_0 : i32, i32
  }
  func.func @transform_5(%arg0: i32) -> (i32, i32) {
    %c0_i32 = arith.constant 0 : i32
    %c0_i32_0 = arith.constant 0 : i32
    %c0_i32_1 = arith.constant 0 : i32
    return %c0_i32, %c0_i32_0 : i32, i32
  }
  func.func @transform_6(%arg0: i32) -> (i32, i32) {
    %c0_i32 = arith.constant 0 : i32
    %c0_i32_0 = arith.constant 0 : i32
    %c0_i32_1 = arith.constant 0 : i32
    return %c0_i32, %c0_i32_0 : i32, i32
  }
  func.func @transform_7(%arg0: i32) -> (i32, i32) {
    %c0_i32 = arith.constant 0 : i32
    %c0_i32_0 = arith.constant 0 : i32
    %c0_i32_1 = arith.constant 0 : i32
    return %c0_i32, %c0_i32_0 : i32, i32
  }
  func.func @transform_8(%arg0: i32) -> (i32, i32) {
    %c0_i32 = arith.constant 0 : i32
    %c0_i32_0 = arith.constant 0 : i32
    %c0_i32_1 = arith.constant 0 : i32
    return %c0_i32, %c0_i32_0 : i32, i32
  }
  func.func @transform_9(%arg0: i32) -> (i32, i32) {
    %c0_i32 = arith.constant 0 : i32
    %c0_i32_0 = arith.constant 0 : i32
    return %arg0, %c0_i32 : i32, i32
  }
  func.func @transform_10(%arg0: i32) -> (i32, i32) {
    %c0_i32 = arith.constant 0 : i32
    %c0_i32_0 = arith.constant 0 : i32
    return %arg0, %c0_i32 : i32, i32
  }
}

</mosaic_0001>

<llo_original>
// kernel: tpu_custom_call.1
$region0: #{tpu_custom_call.1}
  #allocation0 [shape = 'u32[]', space=smem, size = 0x4, offset = 0x4, fixed_abs, tag = 'smem constant byte address 0x4 - core index']
  #allocation1 [shape = 'u32[72,128]{1,0:T(1,128)}', space=vmem, size = 0x9000, scoped, tag = 'internal scratch']
  %s0 = inlined_call_operand.hbm [shape: f32[8,128], index: 0, kind: input, shape index: {}]
  %s1 = inlined_call_operand.hbm [shape: f32[128,128], index: 1, kind: input, shape index: {}]
  %s2 = inlined_call_operand.vmem [shape: f32[1,128], index: 2, kind: input, shape index: {}]
  %s3 = inlined_call_operand.hbm [shape: f32[128,128], index: 3, kind: input, shape index: {}]
  %s4 = inlined_call_operand.vmem [shape: f32[1,128], index: 4, kind: input, shape index: {}]
  %s5 = inlined_call_operand.hbm [shape: f32[128,128], index: 5, kind: input, shape index: {}]
  %s6 = inlined_call_operand.vmem [shape: f32[1,128], index: 6, kind: input, shape index: {}]
  %s7 = inlined_call_operand.hbm [shape: f32[128,128], index: 7, kind: input, shape index: {}]
  %s8 = inlined_call_operand.vmem [shape: f32[1,128], index: 8, kind: input, shape index: {}]
  %s9 = inlined_call_operand.hbm [shape: f32[8,128], index: 9, kind: output, shape index: {0}]
  %s10 = inlined_call_operand.hbm [shape: f32[8,128], index: 10, kind: output, shape index: {1}]
  %11 = xla_tuple %s9, %s10
  %s12 = sld [smem:[#allocation0]]
  $region74: #{tpu_custom_call.1} parent=0
    _
  %s14 = ssub.s32 1, %s12
  %s15 = scalar_select 0, %s14, %s12
  $region1: #{tpu_custom_call.1} parent=0
    #allocation2 [shape = 'u8[4096]{0}', space=vmem, size = 0x1000, scoped, tag = 'input window, operand 0, single buffered']
    #allocation3 [shape = 's32[1]{0}', space=sflag, size = 0x4, scoped, tag = 'scoped memory for tpu_custom_call.1']
    #allocation4 [shape = 's32[1]{0}', space=sflag, size = 0x4, scoped, tag = 'scoped memory for tpu_custom_call.1']
    #allocation5 [shape = 'u8[65536]{0}', space=vmem, size = 0x10000, scoped, tag = 'input window, operand 1, single buffered']
    #allocation6 [shape = 's32[1]{0}', space=sflag, size = 0x4, scoped, tag = 'scoped memory for tpu_custom_call.1']
    #allocation7 [shape = 'u8[65536]{0}', space=vmem, size = 0x10000, scoped, tag = 'input window, operand 3, single buffered']
    #allocation8 [shape = 'u8[65536]{0}', space=vmem, size = 0x10000, scoped, tag = 'input window, operand 5, single buffered']
    #allocation9 [shape = 's32[1]{0}', space=sflag, size = 0x4, scoped, tag = 'scoped memory for tpu_custom_call.1']
    #allocation10 [shape = 'u8[65536]{0}', space=vmem, size = 0x10000, scoped, tag = 'input window, operand 7, single buffered']
    #allocation11 [shape = 'u8[4096]{0}', space=vmem, size = 0x1000, scoped, tag = 'output window, operand 0, single buffered']
    #allocation12 [shape = 'u8[4096]{0}', space=vmem, size = 0x1000, scoped, tag = 'output window, operand 1, single buffered']
    #allocation13 [shape = 's32[1]{0}', space=sflag, size = 0x4, scoped, tag = 'scoped memory for tpu_custom_call.1']
    %16 = vsyncpa [#allocation3], 0
    %17 = vsyncpa [#allocation6], 0
    %18 = vsyncpa [#allocation9], 0
    %19 = vsyncpa [#allocation4], 0
    %20 = vsyncpa [#allocation13], 0
    // Predicated region
    $region2: #{tpu_custom_call.1} parent=1 // pred_check
      _
    $region3: #{tpu_custom_call.1} parent=1 // pred_check_branch
      %22 = sbr.rel (0) target = $region5
    $region4: #{tpu_custom_call.1} parent=1 // pred_region
      %24 = vsyncadd [#allocation3], 0
      %s26 = sshll.u32 %s0, 4
      %s27 = int_to_ptr.hbm [resolvable:$true] %s26
      %s28 = sshll.u32 [#allocation2], 4
      %s29 = int_to_ptr.vmem [resolvable:$true] %s28
      %31 = dma.hbm_to_vmem [thread:$0]  %s27, 128, %s29, [#allocation3]
    $region5: #{tpu_custom_call.1} parent=1 // pred_fallthru
      _
    // Predicated region
    $region6: #{tpu_custom_call.1} parent=1 // pred_check
      _
    $region7: #{tpu_custom_call.1} parent=1 // pred_check_branch
      %33 = sbr.rel (0) target = $region9
    $region8: #{tpu_custom_call.1} parent=1 // pred_region
      %35 = vsyncadd [#allocation6], 0
      %s36 = sshll.u32 %s1, 4
      %s37 = int_to_ptr.hbm [resolvable:$true] %s36
      %s38 = sshll.u32 [#allocation5], 4
      %s39 = int_to_ptr.vmem [resolvable:$true] %s38
      %44 = dma.hbm_to_vmem [thread:$0]  %s37, 2048, %s39, [#allocation6], 128, 128, 8
    $region9: #{tpu_custom_call.1} parent=1 // pred_fallthru
      _
    // Predicated region
    $region10: #{tpu_custom_call.1} parent=1 // pred_check
      _
    $region11: #{tpu_custom_call.1} parent=1 // pred_check_branch
      %46 = sbr.rel (0) target = $region13
    $region12: #{tpu_custom_call.1} parent=1 // pred_region
      _
    $region13: #{tpu_custom_call.1} parent=1 // pred_fallthru
      _
    // Predicated region
    $region14: #{tpu_custom_call.1} parent=1 // pred_check
      _
    $region15: #{tpu_custom_call.1} parent=1 // pred_check_branch
      %48 = sbr.rel (0) target = $region17
    $region16: #{tpu_custom_call.1} parent=1 // pred_region
      %50 = vsyncadd [#allocation6], 0
      %s51 = sshll.u32 %s3, 4
      %s52 = int_to_ptr.hbm [resolvable:$true] %s51
      %s53 = sshll.u32 [#allocation7], 4
      %s54 = int_to_ptr.vmem [resolvable:$true] %s53
      %59 = dma.hbm_to_vmem [thread:$0]  %s52, 2048, %s54, [#allocation6], 128, 128, 8
    $region17: #{tpu_custom_call.1} parent=1 // pred_fallthru
      _
    // Predicated region
    $region18: #{tpu_custom_call.1} parent=1 // pred_check
      _
    $region19: #{tpu_custom_call.1} parent=1 // pred_check_branch
      %61 = sbr.rel (0) target = $region21
    $region20: #{tpu_custom_call.1} parent=1 // pred_region
      _
    $region21: #{tpu_custom_call.1} parent=1 // pred_fallthru
      _
    // Predicated region
    $region22: #{tpu_custom_call.1} parent=1 // pred_check
      _
    $region23: #{tpu_custom_call.1} parent=1 // pred_check_branch
      %63 = sbr.rel (0) target = $region25
    $region24: #{tpu_custom_call.1} parent=1 // pred_region
      %65 = vsyncadd [#allocation9], 0
      %s66 = sshll.u32 %s5, 4
      %s67 = int_to_ptr.hbm [resolvable:$true] %s66
      %s68 = sshll.u32 [#allocation8], 4
      %s69 = int_to_ptr.vmem [resolvable:$true] %s68
      %74 = dma.hbm_to_vmem [thread:$0]  %s67, 2048, %s69, [#allocation9], 128, 128, 8
    $region25: #{tpu_custom_call.1} parent=1 // pred_fallthru
      _
    // Predicated region
    $region26: #{tpu_custom_call.1} parent=1 // pred_check
      _
    $region27: #{tpu_custom_call.1} parent=1 // pred_check_branch
      %76 = sbr.rel (0) target = $region29
    $region28: #{tpu_custom_call.1} parent=1 // pred_region
      _
    $region29: #{tpu_custom_call.1} parent=1 // pred_fallthru
      _
    // Predicated region
    $region30: #{tpu_custom_call.1} parent=1 // pred_check
      _
    $region31: #{tpu_custom_call.1} parent=1 // pred_check_branch
      %78 = sbr.rel (0) target = $region33
    $region32: #{tpu_custom_call.1} parent=1 // pred_region
      %80 = vsyncadd [#allocation9], 0
      %s81 = sshll.u32 %s7, 4
      %s82 = int_to_ptr.hbm [resolvable:$true] %s81
      %s83 = sshll.u32 [#allocation10], 4
      %s84 = int_to_ptr.vmem [resolvable:$true] %s83
      %89 = dma.hbm_to_vmem [thread:$0]  %s82, 2048, %s84, [#allocation9], 128, 128, 8
    $region33: #{tpu_custom_call.1} parent=1 // pred_fallthru
      _
    // Predicated region
    $region34: #{tpu_custom_call.1} parent=1 // pred_check
      _
    $region35: #{tpu_custom_call.1} parent=1 // pred_check_branch
      %91 = sbr.rel (0) target = $region37
    $region36: #{tpu_custom_call.1} parent=1 // pred_region
      _
    $region37: #{tpu_custom_call.1} parent=1 // pred_fallthru
      _
    // Predicated region
    $region38: #{tpu_custom_call.1} parent=1 // pred_check
      _
    $region39: #{tpu_custom_call.1} parent=1 // pred_check_branch
      %93 = sbr.rel (0) target = $region41
    $region40: #{tpu_custom_call.1} parent=1 // pred_region
      %95 = dma.done [#allocation3], 128
    $region41: #{tpu_custom_call.1} parent=1 // pred_fallthru
      _
    // Predicated region
    $region42: #{tpu_custom_call.1} parent=1 // pred_check
      _
    $region43: #{tpu_custom_call.1} parent=1 // pred_check_branch
      %97 = sbr.rel (0) target = $region45
    $region44: #{tpu_custom_call.1} parent=1 // pred_region
      %99 = dma.done [#allocation6], 2048
    $region45: #{tpu_custom_call.1} parent=1 // pred_fallthru
      _
    // Predicated region
    $region46: #{tpu_custom_call.1} parent=1 // pred_check
      _
    $region47: #{tpu_custom_call.1} parent=1 // pred_check_branch
      %101 = sbr.rel (0) target = $region49
    $region48: #{tpu_custom_call.1} parent=1 // pred_region
      %103 = dma.done [#allocation6], 2048
    $region49: #{tpu_custom_call.1} parent=1 // pred_fallthru
      _
    // Predicated region
    $region50: #{tpu_custom_call.1} parent=1 // pred_check
      _
    $region51: #{tpu_custom_call.1} parent=1 // pred_check_branch
      %105 = sbr.rel (0) target = $region53
    $region52: #{tpu_custom_call.1} parent=1 // pred_region
      %107 = dma.done [#allocation9], 2048
    $region53: #{tpu_custom_call.1} parent=1 // pred_fallthru
      _
    // Predicated region
    $region54: #{tpu_custom_call.1} parent=1 // pred_check
      _
    $region55: #{tpu_custom_call.1} parent=1 // pred_check_branch
      %109 = sbr.rel (0) target = $region57
    $region56: #{tpu_custom_call.1} parent=1 // pred_region
      %111 = dma.done [#allocation9], 2048
    $region57: #{tpu_custom_call.1} parent=1 // pred_fallthru
      _
    %v112 = vld [vmem:[#allocation2] sm:$0xff]
    %v113 = vld [vmem:[#allocation5] sm:$0xff]
    %v114 = vld [vmem:[#allocation5 + $0x8] sm:$0xff]
    %v115 = vld [vmem:[#allocation5 + $0x10] sm:$0xff]
    %v116 = vld [vmem:[#allocation5 + $0x18] sm:$0xff]
    %v117 = vld [vmem:[#allocation5 + $0x20] sm:$0xff]
    %v118 = vld [vmem:[#allocation5 + $0x28] sm:$0xff]
    %v119 = vld [vmem:[#allocation5 + $0x30] sm:$0xff]
    %v120 = vld [vmem:[#allocation5 + $0x38] sm:$0xff]
    %v121 = vld [vmem:[#allocation5 + $0x40] sm:$0xff]
    %v122 = vld [vmem:[#allocation5 + $0x48] sm:$0xff]
    %v123 = vld [vmem:[#allocation5 + $0x50] sm:$0xff]
    %v124 = vld [vmem:[#allocation5 + $0x58] sm:$0xff]
    %v125 = vld [vmem:[#allocation5 + $0x60] sm:$0xff]
    %v126 = vld [vmem:[#allocation5 + $0x68] sm:$0xff]
    %v127 = vld [vmem:[#allocation5 + $0x70] sm:$0xff]
    %v128 = vld [vmem:[#allocation5 + $0x78] sm:$0xff]
    %v129 = vld [vmem:[%s2] sm:$0x1]
    %v131 = vperm.slane %v129, 0
    %133 = vmatpush.msra.mxu0 %v128
    %134 = vmatpush.msra.mxu0 %v127
    %135 = vmatpush.msra.mxu0 %v126
    %136 = vmatpush.msra.mxu0 %v125
    %137 = vmatpush.msra.mxu0 %v124
    %138 = vmatpush.msra.mxu0 %v123
    %139 = vmatpush.msra.mxu0 %v122
    %140 = vmatpush.msra.mxu0 %v121
    %141 = vmatpush.msra.mxu0 %v120
    %142 = vmatpush.msra.mxu0 %v119
    %143 = vmatpush.msra.mxu0 %v118
    %144 = vmatpush.msra.mxu0 %v117
    %145 = vmatpush.msra.mxu0 %v116
    %146 = vmatpush.msra.mxu0 %v115
    %147 = vmatpush.msra.mxu0 %v114
    %148 = vmatpush.msra.mxu0 %v113
    %149 = vmatmul.f32.gmra.mxu0 %v112
    %v150 = vpop.f32.mrf.mxu0
    %v151 = vadd.f32 %v131, %v150
    %152 = vdwg.mxu0
    %v153 = vtanh.pop %v151
    %v154 = vld [vmem:[#allocation7] sm:$0xff]
    %v155 = vld [vmem:[#allocation7 + $0x8] sm:$0xff]
    %v156 = vld [vmem:[#allocation7 + $0x10] sm:$0xff]
    %v157 = vld [vmem:[#allocation7 + $0x18] sm:$0xff]
    %v158 = vld [vmem:[#allocation7 + $0x20] sm:$0xff]
    %v159 = vld [vmem:[#allocation7 + $0x28] sm:$0xff]
    %v160 = vld [vmem:[#allocation7 + $0x30] sm:$0xff]
    %v161 = vld [vmem:[#allocation7 + $0x38] sm:$0xff]
    %v162 = vld [vmem:[#allocation7 + $0x40] sm:$0xff]
    %v163 = vld [vmem:[#allocation7 + $0x48] sm:$0xff]
    %v164 = vld [vmem:[#allocation7 + $0x50] sm:$0xff]
    %v165 = vld [vmem:[#allocation7 + $0x58] sm:$0xff]
    %v166 = vld [vmem:[#allocation7 + $0x60] sm:$0xff]
    %v167 = vld [vmem:[#allocation7 + $0x68] sm:$0xff]
    %v168 = vld [vmem:[#allocation7 + $0x70] sm:$0xff]
    %v169 = vld [vmem:[#allocation7 + $0x78] sm:$0xff]
    %v170 = vld [vmem:[%s4] sm:$0x1]
    %v172 = vperm.slane %v170, 0
    %174 = vmatpush.msra.mxu0 %v169
    %175 = vmatpush.msra.mxu0 %v168
    %176 = vmatpush.msra.mxu0 %v167
    %177 = vmatpush.msra.mxu0 %v166
    %178 = vmatpush.msra.mxu0 %v165
    %179 = vmatpush.msra.mxu0 %v164
    %180 = vmatpush.msra.mxu0 %v163
    %181 = vmatpush.msra.mxu0 %v162
    %182 = vmatpush.msra.mxu0 %v161
    %183 = vmatpush.msra.mxu0 %v160
    %184 = vmatpush.msra.mxu0 %v159
    %185 = vmatpush.msra.mxu0 %v158
    %186 = vmatpush.msra.mxu0 %v157
    %187 = vmatpush.msra.mxu0 %v156
    %188 = vmatpush.msra.mxu0 %v155
    %189 = vmatpush.msra.mxu0 %v154
    %190 = vmatmul.f32.gmra.mxu0 %v153
    %v191 = vpop.f32.mrf.mxu0
    %v192 = vadd.f32 %v172, %v191
    %193 = vdwg.mxu0
    %194 = vst [vmem:[#allocation11] sm:$0xff] %v192
    %v195 = vld [vmem:[#allocation8] sm:$0xff]
    %v196 = vld [vmem:[#allocation8 + $0x8] sm:$0xff]
    %v197 = vld [vmem:[#allocation8 + $0x10] sm:$0xff]
    %v198 = vld [vmem:[#allocation8 + $0x18] sm:$0xff]
    %v199 = vld [vmem:[#allocation8 + $0x20] sm:$0xff]
    %v200 = vld [vmem:[#allocation8 + $0x28] sm:$0xff]
    %v201 = vld [vmem:[#allocation8 + $0x30] sm:$0xff]
    %v202 = vld [vmem:[#allocation8 + $0x38] sm:$0xff]
    %v203 = vld [vmem:[#allocation8 + $0x40] sm:$0xff]
    %v204 = vld [vmem:[#allocation8 + $0x48] sm:$0xff]
    %v205 = vld [vmem:[#allocation8 + $0x50] sm:$0xff]
    %v206 = vld [vmem:[#allocation8 + $0x58] sm:$0xff]
    %v207 = vld [vmem:[#allocation8 + $0x60] sm:$0xff]
    %v208 = vld [vmem:[#allocation8 + $0x68] sm:$0xff]
    %v209 = vld [vmem:[#allocation8 + $0x70] sm:$0xff]
    %v210 = vld [vmem:[#allocation8 + $0x78] sm:$0xff]
    %v211 = vld [vmem:[%s6] sm:$0x1]
    %v213 = vperm.slane %v211, 0
    %215 = vmatpush.msra.mxu0 %v210
    %216 = vmatpush.msra.mxu0 %v209
    %217 = vmatpush.msra.mxu0 %v208
    %218 = vmatpush.msra.mxu0 %v207
    %219 = vmatpush.msra.mxu0 %v206
    %220 = vmatpush.msra.mxu0 %v205
    %221 = vmatpush.msra.mxu0 %v204
    %222 = vmatpush.msra.mxu0 %v203
    %223 = vmatpush.msra.mxu0 %v202
    %224 = vmatpush.msra.mxu0 %v201
    %225 = vmatpush.msra.mxu0 %v200
    %226 = vmatpush.msra.mxu0 %v199
    %227 = vmatpush.msra.mxu0 %v198
    %228 = vmatpush.msra.mxu0 %v197
    %229 = vmatpush.msra.mxu0 %v196
    %230 = vmatpush.msra.mxu0 %v195
    %231 = vmatmul.f32.gmra.mxu0 %v112
    %v232 = vpop.f32.mrf.mxu0
    %v233 = vadd.f32 %v213, %v232
    %234 = vdwg.mxu0
    %v235 = vtanh.pop %v233
    %v236 = vld [vmem:[#allocation10] sm:$0xff]
    %v237 = vld [vmem:[#allocation10 + $0x8] sm:$0xff]
    %v238 = vld [vmem:[#allocation10 + $0x10] sm:$0xff]
    %v239 = vld [vmem:[#allocation10 + $0x18] sm:$0xff]
    %v240 = vld [vmem:[#allocation10 + $0x20] sm:$0xff]
    %v241 = vld [vmem:[#allocation10 + $0x28] sm:$0xff]
    %v242 = vld [vmem:[#allocation10 + $0x30] sm:$0xff]
    %v243 = vld [vmem:[#allocation10 + $0x38] sm:$0xff]
    %v244 = vld [vmem:[#allocation10 + $0x40] sm:$0xff]
    %v245 = vld [vmem:[#allocation10 + $0x48] sm:$0xff]
    %v246 = vld [vmem:[#allocation10 + $0x50] sm:$0xff]
    %v247 = vld [vmem:[#allocation10 + $0x58] sm:$0xff]
    %v248 = vld [vmem:[#allocation10 + $0x60] sm:$0xff]
    %v249 = vld [vmem:[#allocation10 + $0x68] sm:$0xff]
    %v250 = vld [vmem:[#allocation10 + $0x70] sm:$0xff]
    %v251 = vld [vmem:[#allocation10 + $0x78] sm:$0xff]
    %v252 = vld [vmem:[%s8] sm:$0x1]
    %v254 = vperm.slane %v252, 0
    %256 = vmatpush.msra.mxu0 %v251
    %257 = vmatpush.msra.mxu0 %v250
    %258 = vmatpush.msra.mxu0 %v249
    %259 = vmatpush.msra.mxu0 %v248
    %260 = vmatpush.msra.mxu0 %v247
    %261 = vmatpush.msra.mxu0 %v246
    %262 = vmatpush.msra.mxu0 %v245
    %263 = vmatpush.msra.mxu0 %v244
    %264 = vmatpush.msra.mxu0 %v243
    %265 = vmatpush.msra.mxu0 %v242
    %266 = vmatpush.msra.mxu0 %v241
    %267 = vmatpush.msra.mxu0 %v240
    %268 = vmatpush.msra.mxu0 %v239
    %269 = vmatpush.msra.mxu0 %v238
    %270 = vmatpush.msra.mxu0 %v237
    %271 = vmatpush.msra.mxu0 %v236
    %272 = vmatmul.f32.gmra.mxu0 %v235
    %v273 = vpop.f32.mrf.mxu0
    %v274 = vadd.f32 %v254, %v273
    %275 = vdwg.mxu0
    %276 = vst [vmem:[#allocation12] sm:$0xff] %v274
    // Predicated region
    $region58: #{tpu_custom_call.1} parent=1 // pred_check
      _
    $region59: #{tpu_custom_call.1} parent=1 // pred_check_branch
      %278 = sbr.rel (0) target = $region61
    $region60: #{tpu_custom_call.1} parent=1 // pred_region
      %280 = vsyncadd [#allocation4], 0
      %s282 = sshll.u32 [#allocation11], 4
      %s283 = int_to_ptr.vmem [resolvable:$true] %s282
      %s284 = sshll.u32 %s9, 4
      %s285 = int_to_ptr.hbm [resolvable:$true] %s284
      %287 = dma.vmem_to_hbm [thread:$0]  %s283, 128, %s285, [#allocation4]
    $region61: #{tpu_custom_call.1} parent=1 // pred_fallthru
      _
    // Predicated region
    $region62: #{tpu_custom_call.1} parent=1 // pred_check
      _
    $region63: #{tpu_custom_call.1} parent=1 // pred_check_branch
      %289 = sbr.rel (0) target = $region65
    $region64: #{tpu_custom_call.1} parent=1 // pred_region
      %291 = vsyncadd [#allocation13], 0
      %s293 = sshll.u32 [#allocation12], 4
      %s294 = int_to_ptr.vmem [resolvable:$true] %s293
      %s295 = sshll.u32 %s10, 4
      %s296 = int_to_ptr.hbm [resolvable:$true] %s295
      %298 = dma.vmem_to_hbm [thread:$0]  %s294, 128, %s296, [#allocation13]
    $region65: #{tpu_custom_call.1} parent=1 // pred_fallthru
      _
    // Predicated region
    $region66: #{tpu_custom_call.1} parent=1 // pred_check
      _
    $region67: #{tpu_custom_call.1} parent=1 // pred_check_branch
      %300 = sbr.rel (0) target = $region69
    $region68: #{tpu_custom_call.1} parent=1 // pred_region
      %302 = dma.done [#allocation4], 128
    $region69: #{tpu_custom_call.1} parent=1 // pred_fallthru
      _
    // Predicated region
    $region70: #{tpu_custom_call.1} parent=1 // pred_check
      _
    $region71: #{tpu_custom_call.1} parent=1 // pred_check_branch
      %304 = sbr.rel (0) target = $region73
    $region72: #{tpu_custom_call.1} parent=1 // pred_region
      %306 = dma.done [#allocation13], 128
    $region73: #{tpu_custom_call.1} parent=1 // pred_fallthru
      _
    %307 = vsyncpa [#allocation3], 1
    %308 = vsyncpa [#allocation6], 1
    %309 = vsyncpa [#allocation9], 1
    %310 = vsyncpa [#allocation4], 1
    %311 = vsyncpa [#allocation13], 1

</llo_original>
